<compile_context>
chip_gen: v7x
topology: tpu7x:2x2x1
jax: 0.10.0
libtpu: 0.0.40
codegen_flags: <defaults>
</compile_context>

<pallas_src>
import functools

import jax
import jax.numpy as jnp
from jax import lax
from jax.experimental import pallas as pl
from jax.experimental.pallas import tpu as pltpu

_LANES = 128
_C = 1.0  # Fair.__init__ fixes self.c = 1.0


def _sublane_multiple(dtype):
    # f32 -> 8, bf16/f16 -> 16, int8/fp8 -> 32 (sublane packing).
    return max(8, 32 // jnp.dtype(dtype).itemsize)


def _fair_error_f32(x, y):
    r = x.astype(jnp.float32) - y.astype(jnp.float32)
    ra = jnp.abs(r)
    if _C == 1.0:
        # c == 1: drop /c and c*c; log1p matches torch.log(1 + ra) (better
        # conditioned for small residuals).
        return ra - jnp.log1p(ra)
    s = ra * (1.0 / _C)
    return (_C * _C) * (s - jnp.log1p(s))


def _fair_scalar_kernel(x_ref, y_ref, o_ref):
    """Single-step path: full reduce to a scalar in SMEM (no 2nd launch)."""
    err = _fair_error_f32(x_ref[...], y_ref[...])
    o_ref[0, 0] = jnp.sum(err)


def _fair_partial_kernel(x_ref, y_ref, o_ref, *, rows, block_rows):
    """Multi-step path: per-program lane-dense (1,128) partial sums."""
    err = _fair_error_f32(x_ref[...], y_ref[...])
    if rows % block_rows != 0:
        # Mask the (unspecified) out-of-range rows of the partial last block.
        valid = rows - pl.program_id(0) * block_rows
        row_idx = lax.broadcasted_iota(jnp.int32, err.shape, 0)
        err = jnp.where(row_idx < valid, err, 0.0)
    o_ref[...] = jnp.sum(err, axis=0, keepdims=True)


@functools.partial(
    jax.jit, static_argnames=("max_block_rows", "single_block_max_rows")
)
def fair_loss(x, y, *, max_block_rows=8192, single_block_max_rows=4096):
    assert x.shape == y.shape, "X and Y must have the same shape"

    cols = _LANES
    n = x.size
    mult = max(_sublane_multiple(x.dtype), _sublane_multiple(y.dtype))
    assert max_block_rows >= mult, "max_block_rows below sublane multiple"

    # Lane-dense slab in the NATIVE dtype (no f32 copy through HBM).
    xf = x.reshape(-1)
    yf = y.reshape(-1)
    rem = n % cols
    if rem != 0:
        # Minimal pad so the flat vector reshapes to (rows, 128); the zero
        # pad contributes exactly 0 to the loss (|0-0| - log1p(0) == 0).
        # Not hit for the module's (2,4,16,16) workload.
        pad = cols - rem
        xf = jnp.pad(xf, (0, pad))
        yf = jnp.pad(yf, (0, pad))
    rows = xf.size // cols
    x2 = xf.reshape(rows, cols)
    y2 = yf.reshape(rows, cols)

    bytes_in = (x2.dtype.itemsize + y2.dtype.itemsize) * rows * cols

    if rows <= single_block_max_rows:
        # Whole slab fits VMEM comfortably: one grid-less call, in-kernel full
        # reduction, scalar SMEM output.
        out = pl.pallas_call(
            _fair_scalar_kernel,
            out_shape=jax.ShapeDtypeStruct((1, 1), jnp.float32),
            in_specs=[
                pl.BlockSpec(memory_space=pltpu.MemorySpace.VMEM),
                pl.BlockSpec(memory_space=pltpu.MemorySpace.VMEM),
            ],
            out_specs=pl.BlockSpec(memory_space=pltpu.MemorySpace.SMEM),
            cost_estimate=pl.CostEstimate(
                flops=5 * rows * cols,
                transcendentals=rows * cols,
                bytes_accessed=bytes_in + 4,
            ),
        )(x2, y2)
        return out[0, 0]

    # Large inputs: big blocks to amortize the ~0.35us/step overhead, but
    # clamp so the grid has >= 2 parallel steps (both v7x TCs stream HBM).
    half = ((pl.cdiv(rows, 2) + mult - 1) // mult) * mult
    block_rows = min(max_block_rows - (max_block_rows % mult), half)
    block_rows = max(block_rows, mult)
    num_blocks = pl.cdiv(rows, block_rows)

    kernel = functools.partial(
        _fair_partial_kernel, rows=rows, block_rows=block_rows
    )

    partials = pl.pallas_call(
        kernel,
        out_shape=jax.ShapeDtypeStruct((num_blocks, cols), jnp.float32),
        grid_spec=pltpu.PrefetchScalarGridSpec(
            num_scalar_prefetch=0,
            grid=(num_blocks,),
            in_specs=[
                pl.BlockSpec((block_rows, cols), lambda i: (i, 0)),
                pl.BlockSpec((block_rows, cols), lambda i: (i, 0)),
            ],
            out_specs=pl.BlockSpec((1, cols), lambda i: (i, 0)),
        ),
        compiler_params=pltpu.CompilerParams(
            dimension_semantics=("parallel",),  # independent partial sums
            # 2 inputs x 2 pipeline buffers x 4 MiB = 16 MiB; raise the scoped
            # limit so v5e (16 MiB default) also takes the big blocks.
            vmem_limit_bytes=32 << 20,
        ),
        cost_estimate=pl.CostEstimate(
            flops=5 * rows * cols,
            transcendentals=rows * cols,
            bytes_accessed=bytes_in + 4 * num_blocks * cols,
        ),
    )(x2, y2)

    # Tiny final reduction of (num_blocks, 128) partials outside the kernel.
    return jnp.sum(partials)


def fair_loss_ref(x, y):
    r = x.astype(jnp.float32) - y.astype(jnp.float32)
    ra = jnp.abs(r)
    err = (_C ** 2) * (ra / _C - jnp.log(1.0 + ra / _C))
    return jnp.sum(err)


if __name__ == "__main__":
    key = jax.random.PRNGKey(0)
    kx, ky = jax.random.split(key)
    # NCHW, same convention as the PyTorch module's inputs.
    X = jax.random.normal(kx, (2, 4, 16, 16), dtype=jnp.float32)
    Y = jax.random.normal(ky, (2, 4, 16, 16), dtype=jnp.float32)

    loss = fair_loss(X, Y)
    jax.block_until_ready(loss)

    ref = fair_loss_ref(X, Y)
    assert jnp.allclose(loss, ref, rtol=1e-5, atol=1e-4), (loss, ref)

    # Also exercise the multi-block (ragged, masked) path for coverage.
    kx2, ky2 = jax.random.split(ky)
    Xb = jax.random.normal(kx2, (3, 7, 123, 37), dtype=jnp.float32)
    Yb = jax.random.normal(ky2, (3, 7, 123, 37), dtype=jnp.float32)
    loss_b = fair_loss(Xb, Yb, max_block_rows=64, single_block_max_rows=16)
    jax.block_until_ready(loss_b)
    ref_b = fair_loss_ref(Xb, Yb)
    assert jnp.allclose(loss_b, ref_b, rtol=1e-5, atol=1e-3), (loss_b, ref_b)

    print("KERNEL_OK")
</pallas_src>

<mosaic_0001>
module attributes {stable_mosaic.version = 11 : i64} {
  func.func @_fair_scalar_kernel(%arg0: memref<16x128xf32, #tpu.memory_space<vmem>>, %arg1: memref<16x128xf32, #tpu.memory_space<vmem>>, %arg2: memref<1x1xf32, #tpu.memory_space<smem>>) attributes {dimension_semantics = [], scalar_prefetch = 0 : i64, scratch_operands = 0 : i64, tpu.core_type = #tpu.core_type<tc>} {
    %c0 = arith.constant 0 : index
    %c0_0 = arith.constant 0 : index
    %0 = vector.load %arg0[%c0, %c0_0] : memref<16x128xf32, #tpu.memory_space<vmem>>, vector<16x128xf32>
    %c0_1 = arith.constant 0 : index
    %c0_2 = arith.constant 0 : index
    %1 = vector.load %arg1[%c0_1, %c0_2] : memref<16x128xf32, #tpu.memory_space<vmem>>, vector<16x128xf32>
    %2 = arith.subf %0, %1 : vector<16x128xf32>
    %3 = math.absf %2 : vector<16x128xf32>
    %4 = math.log1p %3 : vector<16x128xf32>
    %5 = arith.subf %3, %4 : vector<16x128xf32>
    %6 = vector.shape_cast %5 : vector<16x128xf32> to vector<1x16x128xf32>
    %cst = arith.constant dense<0.000000e+00> : vector<1xf32>
    %7 = vector.multi_reduction <add>, %6, %cst [1, 2] : vector<1x16x128xf32> to vector<1xf32>
    %8 = vector.shape_cast %7 : vector<1xf32> to vector<1x1x1xf32>
    %9 = vector.extract %8[0, 0, 0] : f32 from vector<1x1x1xf32>
    %c0_3 = arith.constant 0 : index
    %c0_4 = arith.constant 0 : index
    %10 = memref.load %arg2[%c0_3, %c0_4] : memref<1x1xf32, #tpu.memory_space<smem>>
    memref.store %9, %arg2[%c0_3, %c0_4] : memref<1x1xf32, #tpu.memory_space<smem>>
    return
  }
}

</mosaic_0001>

<llo_original>
// kernel: fair_loss.1
$region0: #{fair_loss.1}
  #allocation0 [shape = 'u32[]', space=smem, size = 0x4, offset = 0x4, fixed_abs, tag = 'smem constant byte address 0x4 - core index']
  #allocation1 [shape = 'u32[144,128]{1,0:T(1,128)}', space=vmem, size = 0x12000, scoped, tag = 'internal scratch']
  %s0 = inlined_call_operand.vmem [shape: f32[16,128], index: 0, kind: input, shape index: {}]
  %s1 = inlined_call_operand.vmem [shape: f32[16,128], index: 1, kind: input, shape index: {}]
  %s2 = inlined_call_operand.hbm [shape: f32[1,1], index: 2, kind: output, shape index: {}]
  %s3 = sld [smem:[#allocation0]]
  $region18: #{fair_loss.1} parent=0
    _
  %s5 = ssub.s32 1, %s3
  %s6 = scalar_select 0, %s5, %s3
  $region1: #{fair_loss.1} parent=0
    #allocation2 [shape = 'u8[512]{0}', space=smem, size = 0x200, scoped, tag = 'output window, operand 0, single buffered']
    #allocation3 [shape = 's32[1]{0}', space=sflag, size = 0x4, scoped, tag = 'scoped memory for fair_loss.1']
    %7 = vsyncpa [#allocation3], 0
    // Predicated region
    $region2: #{fair_loss.1} parent=1 // pred_check
      _
    $region3: #{fair_loss.1} parent=1 // pred_check_branch
      %9 = sbr.rel (0) target = $region5
    $region4: #{fair_loss.1} parent=1 // pred_region
      _
    $region5: #{fair_loss.1} parent=1 // pred_fallthru
      _
    // Predicated region
    $region6: #{fair_loss.1} parent=1 // pred_check
      _
    $region7: #{fair_loss.1} parent=1 // pred_check_branch
      %11 = sbr.rel (0) target = $region9
    $region8: #{fair_loss.1} parent=1 // pred_region
      _
    $region9: #{fair_loss.1} parent=1 // pred_fallthru
      _
    %v12 = vld [vmem:[%s0] sm:$0xff]
    %v13 = vld [vmem:[%s0 + $0x8] sm:$0xff]
    %v14 = vld [vmem:[%s1] sm:$0xff]
    %v15 = vld [vmem:[%s1 + $0x8] sm:$0xff]
    %v16 = vsub.f32 %v12, %v14
    %v17 = vsub.f32 %v13, %v15
    %v18 = vand.u32 2147483647, %v16
    %v19 = vand.u32 2147483647, %v17
    %v20 = vadd.f32 %v18, 1.0
    %v21 = vlog2.pop %v20
    %v22 = vmul.f32 %v21, 0.6931472
    %v23 = vmul.f32 -0.5, %v18
    %v24 = vadd.f32 %v23, 1.0
    %v25 = vmul.f32 %v24, %v18
    %v26 = vand.u32 2147483647, %v18
    %vm27 = vcmp.lt.f32.partialorder %v26, 0.0004427343
    %v28 = vsel %vm27, %v25, %v22
    %v29 = vadd.f32 %v19, 1.0
    %v30 = vlog2.pop %v29
    %v31 = vmul.f32 %v30, 0.6931472
    %v32 = vmul.f32 -0.5, %v19
    %v33 = vadd.f32 %v32, 1.0
    %v34 = vmul.f32 %v33, %v19
    %v35 = vand.u32 2147483647, %v19
    %vm36 = vcmp.lt.f32.partialorder %v35, 0.0004427343
    %v37 = vsel %vm36, %v34, %v31
    %v38 = vsub.f32 %v18, %v28
    %v39 = vsub.f32 %v19, %v37
    %v40 = vadd.f32 %v38, %v39
    %41 = vadd.xlane.f32.xlu0 %v40
    %v42 = vpop.xlane.xlu0 %41
    %v43 = vrot.slane %v42, 4
    %v44 = vadd.f32 %v42, %v43
    %v45 = vrot.slane %v44, 2
    %v46 = vadd.f32 %v44, %v45
    %v47 = vrot.slane %v46, 1
    %v48 = vadd.f32 %v46, %v47
    %s49 = vtos %v48
    %s50 = scalar_lea.smem [#allocation2], 0
    %51 = sst [smem:[%s50]] %s49
    // Predicated region
    $region10: #{fair_loss.1} parent=1 // pred_check
      _
    $region11: #{fair_loss.1} parent=1 // pred_check_branch
      %53 = sbr.rel (0) target = $region13
    $region12: #{fair_loss.1} parent=1 // pred_region
      %s55 = ssub.s32 16, 16
      %56 = vsyncadd [#allocation3], %s55
      %59 = dma.smem_to_hbm [#allocation2], 16, %s2, [#allocation3]
    $region13: #{fair_loss.1} parent=1 // pred_fallthru
      _
    // Predicated region
    $region14: #{fair_loss.1} parent=1 // pred_check
      _
    $region15: #{fair_loss.1} parent=1 // pred_check_branch
      %61 = sbr.rel (0) target = $region17
    $region16: #{fair_loss.1} parent=1 // pred_region
      %62 = dma.done [#allocation3], 16
    $region17: #{fair_loss.1} parent=1 // pred_fallthru
      _
    %63 = sfence
    %64 = vsyncpa [#allocation3], 1

</llo_original>
